<compile_context>
chip_gen: v7x
topology: tpu7x:2x2x1
jax: 0.10.0
libtpu: 0.0.40
codegen_flags: <defaults>
</compile_context>

<pallas_src>
import math

import jax
import jax.numpy as jnp
import numpy as np
from jax.experimental import pallas as pl
from jax.experimental.pallas import tpu as pltpu

B = 2
S = 8
HID = 32
FF = 4 * HID          # 128
EPS = 1e-6


def sublayer_connection_kernel(x_ref, ln_ref, w1_ref, b1_ref, w2_ref, b2_ref, out_ref):
    """x_ref:(tm,HID) f32; ln_ref:(2,HID) f32 [gamma;beta]; w1_ref:(HID,FF) bf16;
    b1_ref:(1,FF) f32; w2_ref:(FF,HID) bf16; b2_ref:(1,HID) f32; out_ref:(tm,HID) f32."""
    x = x_ref[...]                                   # (tm, HID) f32
    gamma = ln_ref[0:1, :]                           # (1, HID)
    beta = ln_ref[1:2, :]                            # (1, HID)

    # ---- LayerNorm (torch semantics: unbiased std, denominator = std + eps) ----
    # One-pass moments: both XLU reductions issue back-to-back.
    s1 = jnp.sum(x, axis=-1, keepdims=True)          # sum(x)
    s2 = jnp.sum(x * x, axis=-1, keepdims=True)      # sum(x^2)
    mu = s1 * jnp.float32(1.0 / HID)
    var = (s2 - s1 * mu) * jnp.float32(1.0 / (HID - 1))     # unbiased variance
    var = jnp.maximum(var, jnp.float32(0.0))                 # guard fp cancellation
    inv = pl.reciprocal(jnp.sqrt(var) + jnp.float32(EPS), approx=True)   # EUP slot
    xn = gamma * ((x - mu) * inv) + beta             # (tm, HID) f32

    # ---- sublayer: position-wise FFN (bf16 MXU operands, f32 accumulation) ----
    # TODO(synk): `sublayer` in the PyTorch module is an arbitrary same-size
    # callable; instantiated here as the canonical Linear->ReLU->Linear FFN.
    h = jnp.dot(xn.astype(jnp.bfloat16), w1_ref[...],
                preferred_element_type=jnp.float32) + b1_ref[...]        # (tm, FF) f32
    h = jnp.maximum(h.astype(jnp.bfloat16), jnp.bfloat16(0.0))           # bf16 ReLU
    ff = jnp.dot(h, w2_ref[...],
                 preferred_element_type=jnp.float32) + b2_ref[...]       # (tm, HID) f32

    # ---- dropout (identity in eval) + residual ----
    out_ref[...] = x + ff


def prepare_params(gamma, beta, w1, b1, w2, b2):
    """One-time parameter packing/casting (hoisted out of the per-call path)."""
    return (
        jnp.stack([gamma, beta], axis=0).astype(jnp.float32),   # (2, HID)
        w1.astype(jnp.bfloat16),                                 # (HID, FF)
        b1.reshape(1, -1).astype(jnp.float32),                   # (1, FF)
        w2.astype(jnp.bfloat16),                                 # (FF, HID)
        b2.reshape(1, -1).astype(jnp.float32),                   # (1, HID)
    )


def sublayer_connection(x, params, *, tm=256):
    """x: (B, S, HID) f32 -> (B, S, HID) f32 = x + FFN(LayerNorm(x))."""
    ln, w1p, b1p, w2p, b2p = params
    Bx, Sx, Hx = x.shape
    T = Bx * Sx
    xf = x.reshape(T, Hx).astype(jnp.float32)

    # Token tile: multiple of 8 (f32 sublane), capped at 256; f32 (tm, FF)
    # intermediate x2 buffers stay far under the v7x 64 MiB VMEM budget.
    tm = min(tm, max(8, ((T + 7) // 8) * 8))
    T_pad = ((T + tm - 1) // tm) * tm
    if T_pad != T:
        xf = jnp.pad(xf, ((0, T_pad - T), (0, 0)))

    grid = (T_pad // tm,)
    out = pl.pallas_call(
        sublayer_connection_kernel,
        out_shape=jax.ShapeDtypeStruct((T_pad, Hx), jnp.float32),
        grid=grid,
        in_specs=[
            pl.BlockSpec((tm, Hx), lambda i: (i, 0)),        # x: tiled over tokens
            pl.BlockSpec((2, Hx), lambda i: (0, 0)),         # [gamma; beta], resident
            pl.BlockSpec((Hx, FF), lambda i: (0, 0)),        # w1, resident
            pl.BlockSpec((1, FF), lambda i: (0, 0)),         # b1, resident
            pl.BlockSpec((FF, Hx), lambda i: (0, 0)),        # w2, resident
            pl.BlockSpec((1, Hx), lambda i: (0, 0)),         # b2, resident
        ],
        out_specs=pl.BlockSpec((tm, Hx), lambda i: (i, 0)),
        compiler_params=pltpu.CompilerParams(
            dimension_semantics=("parallel",),               # megacore sharding on v7x
            vmem_limit_bytes=32 * 1024 * 1024,
        ),
    )(xf, ln, w1p, b1p, w2p, b2p)

    return out[:T].reshape(Bx, Sx, Hx)


# ----------------------- pure-JAX reference (f32) ---------------------------
def reference(x, gamma, beta, w1, b1, w2, b2):
    mu = jnp.mean(x, axis=-1, keepdims=True)
    var = jnp.sum((x - mu) ** 2, axis=-1, keepdims=True) / (HID - 1)     # unbiased
    std = jnp.sqrt(var)
    xn = gamma * (x - mu) / (std + EPS) + beta
    h = jnp.maximum(xn @ w1 + b1, 0.0)
    ff = h @ w2 + b2
    return x + ff


if __name__ == "__main__":
    key = jax.random.PRNGKey(0)
    kx, kg, kb, k1w, k1b, k2w, k2b = jax.random.split(key, 7)

    x = jax.random.normal(kx, (B, S, HID), jnp.float32)
    gamma = 1.0 + 0.1 * jax.random.normal(kg, (HID,), jnp.float32)
    beta = 0.1 * jax.random.normal(kb, (HID,), jnp.float32)
    w1 = jax.random.normal(k1w, (HID, FF), jnp.float32) * (1.0 / math.sqrt(HID))
    b1 = 0.01 * jax.random.normal(k1b, (FF,), jnp.float32)
    w2 = jax.random.normal(k2w, (FF, HID), jnp.float32) * (1.0 / math.sqrt(FF))
    b2 = 0.01 * jax.random.normal(k2b, (HID,), jnp.float32)

    # Parameters packed/cast ONCE at init time (not per call).
    params = prepare_params(gamma, beta, w1, b1, w2, b2)
    params = jax.tree_util.tree_map(jax.block_until_ready, params)

    out = jax.block_until_ready(sublayer_connection(x, params))

    ref = reference(x, gamma, beta, w1, b1, w2, b2)
    np.testing.assert_allclose(np.asarray(out), np.asarray(ref), rtol=5e-2, atol=5e-2)
    print("KERNEL_OK")
</pallas_src>

<mosaic_0001>
module attributes {stable_mosaic.version = 11 : i64} {
  func.func @sublayer_connection_kernel(%arg0: i32, %arg1: memref<16x32xf32, #tpu.memory_space<vmem>>, %arg2: memref<2x32xf32, #tpu.memory_space<vmem>>, %arg3: memref<32x128xbf16, #tpu.memory_space<vmem>>, %arg4: memref<1x128xf32, #tpu.memory_space<vmem>>, %arg5: memref<128x32xbf16, #tpu.memory_space<vmem>>, %arg6: memref<1x32xf32, #tpu.memory_space<vmem>>, %arg7: memref<16x32xf32, #tpu.memory_space<vmem>>) attributes {dimension_semantics = [#tpu.dimension_semantics<parallel>], iteration_bounds = array<i64: 1>, scalar_prefetch = 0 : i64, scratch_operands = 0 : i64, tpu.core_type = #tpu.core_type<tc>, window_params = [{transform_indices = @transform_0, window_bounds = array<i64: 16, 32>}, {pipeline_mode = #tpu.pipeline_mode<synchronous>, transform_indices = @transform_1, window_bounds = array<i64: 2, 32>}, {pipeline_mode = #tpu.pipeline_mode<synchronous>, transform_indices = @transform_2, window_bounds = array<i64: 32, 128>}, {pipeline_mode = #tpu.pipeline_mode<synchronous>, transform_indices = @transform_3, window_bounds = array<i64: 1, 128>}, {pipeline_mode = #tpu.pipeline_mode<synchronous>, transform_indices = @transform_4, window_bounds = array<i64: 128, 32>}, {pipeline_mode = #tpu.pipeline_mode<synchronous>, transform_indices = @transform_5, window_bounds = array<i64: 1, 32>}, {transform_indices = @transform_6, window_bounds = array<i64: 16, 32>}]} {
    %c0 = arith.constant 0 : index
    %c0_0 = arith.constant 0 : index
    %0 = vector.load %arg1[%c0, %c0_0] : memref<16x32xf32, #tpu.memory_space<vmem>>, vector<16x32xf32>
    %c0_1 = arith.constant 0 : index
    %c0_2 = arith.constant 0 : index
    %1 = vector.load %arg2[%c0_1, %c0_2] : memref<2x32xf32, #tpu.memory_space<vmem>>, vector<1x32xf32>
    %c1 = arith.constant 1 : index
    %c0_3 = arith.constant 0 : index
    %2 = vector.load %arg2[%c1, %c0_3] : memref<2x32xf32, #tpu.memory_space<vmem>>, vector<1x32xf32>
    %cst = arith.constant dense<0.000000e+00> : vector<16xf32>
    %3 = vector.multi_reduction <add>, %0, %cst [1] : vector<16x32xf32> to vector<16xf32>
    %4 = vector.shape_cast %3 : vector<16xf32> to vector<16x1xf32>
    %5 = arith.mulf %0, %0 : vector<16x32xf32>
    %cst_4 = arith.constant dense<0.000000e+00> : vector<16xf32>
    %6 = vector.multi_reduction <add>, %5, %cst_4 [1] : vector<16x32xf32> to vector<16xf32>
    %7 = vector.shape_cast %6 : vector<16xf32> to vector<16x1xf32>
    %cst_5 = arith.constant 3.125000e-02 : f32
    %8 = vector.broadcast %cst_5 : f32 to vector<16x1xf32>
    %9 = arith.mulf %4, %8 : vector<16x1xf32>
    %10 = arith.mulf %4, %9 : vector<16x1xf32>
    %11 = arith.subf %7, %10 : vector<16x1xf32>
    %cst_6 = arith.constant 0.0322580636 : f32
    %12 = vector.broadcast %cst_6 : f32 to vector<16x1xf32>
    %13 = arith.mulf %11, %12 : vector<16x1xf32>
    %cst_7 = arith.constant 0.000000e+00 : f32
    %14 = vector.broadcast %cst_7 : f32 to vector<16x1xf32>
    %15 = arith.maximumf %13, %14 : vector<16x1xf32>
    %16 = math.sqrt %15 : vector<16x1xf32>
    %cst_8 = arith.constant 9.99999997E-7 : f32
    %17 = vector.broadcast %cst_8 : f32 to vector<16x1xf32>
    %18 = arith.addf %16, %17 : vector<16x1xf32>
    %19 = tpu.reciprocal %18 {approx = true} : vector<16x1xf32> -> vector<16x1xf32>
    %20 = vector.broadcast %9 : vector<16x1xf32> to vector<16x32xf32>
    %21 = arith.subf %0, %20 : vector<16x32xf32>
    %22 = vector.broadcast %19 : vector<16x1xf32> to vector<16x32xf32>
    %23 = arith.mulf %21, %22 : vector<16x32xf32>
    %24 = vector.broadcast %1 : vector<1x32xf32> to vector<16x32xf32>
    %25 = arith.mulf %24, %23 : vector<16x32xf32>
    %26 = vector.broadcast %2 : vector<1x32xf32> to vector<16x32xf32>
    %27 = arith.addf %25, %26 : vector<16x32xf32>
    %28 = arith.truncf %27 : vector<16x32xf32> to vector<16x32xbf16>
    %c0_9 = arith.constant 0 : index
    %c0_10 = arith.constant 0 : index
    %29 = vector.load %arg3[%c0_9, %c0_10] : memref<32x128xbf16, #tpu.memory_space<vmem>>, vector<32x128xbf16>
    %cst_11 = arith.constant dense<0.000000e+00> : vector<16x128xf32>
    %30 = tpu.matmul %28, %29, %cst_11 {dimension_numbers = #tpu.dot_dimension_numbers<[1], [0], [0], [1], [0, 0, 1, 1], [], []>} : vector<16x32xbf16>, vector<32x128xbf16>, vector<16x128xf32> -> vector<16x128xf32>
    %c0_12 = arith.constant 0 : index
    %c0_13 = arith.constant 0 : index
    %31 = vector.load %arg4[%c0_12, %c0_13] : memref<1x128xf32, #tpu.memory_space<vmem>>, vector<1x128xf32>
    %32 = vector.broadcast %31 : vector<1x128xf32> to vector<16x128xf32>
    %33 = arith.addf %30, %32 : vector<16x128xf32>
    %34 = arith.truncf %33 : vector<16x128xf32> to vector<16x128xbf16>
    %cst_14 = arith.constant 0.000000e+00 : bf16
    %35 = vector.broadcast %cst_14 : bf16 to vector<16x128xbf16>
    %36 = arith.maximumf %34, %35 : vector<16x128xbf16>
    %c0_15 = arith.constant 0 : index
    %c0_16 = arith.constant 0 : index
    %37 = vector.load %arg5[%c0_15, %c0_16] : memref<128x32xbf16, #tpu.memory_space<vmem>>, vector<128x32xbf16>
    %cst_17 = arith.constant dense<0.000000e+00> : vector<16x32xf32>
    %38 = tpu.matmul %36, %37, %cst_17 {dimension_numbers = #tpu.dot_dimension_numbers<[1], [0], [0], [1], [0, 0, 1, 1], [], []>} : vector<16x128xbf16>, vector<128x32xbf16>, vector<16x32xf32> -> vector<16x32xf32>
    %c0_18 = arith.constant 0 : index
    %c0_19 = arith.constant 0 : index
    %39 = vector.load %arg6[%c0_18, %c0_19] : memref<1x32xf32, #tpu.memory_space<vmem>>, vector<1x32xf32>
    %40 = vector.broadcast %39 : vector<1x32xf32> to vector<16x32xf32>
    %41 = arith.addf %38, %40 : vector<16x32xf32>
    %42 = arith.addf %0, %41 : vector<16x32xf32>
    %c0_20 = arith.constant 0 : index
    %c0_21 = arith.constant 0 : index
    %43 = vector.load %arg7[%c0_20, %c0_21] : memref<16x32xf32, #tpu.memory_space<vmem>>, vector<16x32xf32>
    tpu.vector_store %arg7[%c0_20, %c0_21], %42 {strides = array<i32>} : memref<16x32xf32, #tpu.memory_space<vmem>>, vector<16x32xf32>,
    return
  }
  func.func @transform_0(%arg0: i32) -> (i32, i32) {
    %c0_i32 = arith.constant 0 : i32
    %c0_i32_0 = arith.constant 0 : i32
    return %arg0, %c0_i32 : i32, i32
  }
  func.func @transform_1(%arg0: i32) -> (i32, i32) {
    %c0_i32 = arith.constant 0 : i32
    %c0_i32_0 = arith.constant 0 : i32
    %c0_i32_1 = arith.constant 0 : i32
    return %c0_i32, %c0_i32_0 : i32, i32
  }
  func.func @transform_2(%arg0: i32) -> (i32, i32) {
    %c0_i32 = arith.constant 0 : i32
    %c0_i32_0 = arith.constant 0 : i32
    %c0_i32_1 = arith.constant 0 : i32
    return %c0_i32, %c0_i32_0 : i32, i32
  }
  func.func @transform_3(%arg0: i32) -> (i32, i32) {
    %c0_i32 = arith.constant 0 : i32
    %c0_i32_0 = arith.constant 0 : i32
    %c0_i32_1 = arith.constant 0 : i32
    return %c0_i32, %c0_i32_0 : i32, i32
  }
  func.func @transform_4(%arg0: i32) -> (i32, i32) {
    %c0_i32 = arith.constant 0 : i32
    %c0_i32_0 = arith.constant 0 : i32
    %c0_i32_1 = arith.constant 0 : i32
    return %c0_i32, %c0_i32_0 : i32, i32
  }
  func.func @transform_5(%arg0: i32) -> (i32, i32) {
    %c0_i32 = arith.constant 0 : i32
    %c0_i32_0 = arith.constant 0 : i32
    %c0_i32_1 = arith.constant 0 : i32
    return %c0_i32, %c0_i32_0 : i32, i32
  }
  func.func @transform_6(%arg0: i32) -> (i32, i32) {
    %c0_i32 = arith.constant 0 : i32
    %c0_i32_0 = arith.constant 0 : i32
    return %arg0, %c0_i32 : i32, i32
  }
}

</mosaic_0001>

<llo_original>
// kernel: tpu_custom_call.1
$region0: #{tpu_custom_call.1}
  #allocation0 [shape = 'u32[]', space=smem, size = 0x4, offset = 0x4, fixed_abs, tag = 'smem constant byte address 0x4 - core index']
  #allocation1 [shape = 'u32[144,128]{1,0:T(1,128)}', space=vmem, size = 0x12000, scoped, tag = 'internal scratch']
  %s0 = inlined_call_operand.vmem [shape: f32[16,32], index: 0, kind: input, shape index: {}]
  %s1 = inlined_call_operand.vmem [shape: f32[2,32], index: 1, kind: input, shape index: {}]
  %s2 = inlined_call_operand.vmem [shape: bf16[32,128], index: 2, kind: input, shape index: {}]
  %s3 = inlined_call_operand.vmem [shape: f32[1,128], index: 3, kind: input, shape index: {}]
  %s4 = inlined_call_operand.vmem [shape: bf16[128,32], index: 4, kind: input, shape index: {}]
  %s5 = inlined_call_operand.vmem [shape: f32[1,32], index: 5, kind: input, shape index: {}]
  %s6 = inlined_call_operand.hbm [shape: f32[16,32], index: 6, kind: output, shape index: {}]
  %s7 = sld [smem:[#allocation0]]
  $region34: #{tpu_custom_call.1} parent=0
    _
  %s9 = ssub.s32 1, %s7
  %s10 = scalar_select 0, %s9, %s7
  $region1: #{tpu_custom_call.1} parent=0
    #allocation2 [shape = 'u8[8192]{0}', space=vmem, size = 0x2000, scoped, tag = 'output window, operand 0, single buffered']
    #allocation3 [shape = 's32[1]{0}', space=sflag, size = 0x4, scoped, tag = 'scoped memory for tpu_custom_call.1']
    %11 = vsyncpa [#allocation3], 0
    // Predicated region
    $region2: #{tpu_custom_call.1} parent=1 // pred_check
      _
    $region3: #{tpu_custom_call.1} parent=1 // pred_check_branch
      %13 = sbr.rel (0) target = $region5
    $region4: #{tpu_custom_call.1} parent=1 // pred_region
      _
    $region5: #{tpu_custom_call.1} parent=1 // pred_fallthru
      _
    // Predicated region
    $region6: #{tpu_custom_call.1} parent=1 // pred_check
      _
    $region7: #{tpu_custom_call.1} parent=1 // pred_check_branch
      %15 = sbr.rel (0) target = $region9
    $region8: #{tpu_custom_call.1} parent=1 // pred_region
      _
    $region9: #{tpu_custom_call.1} parent=1 // pred_fallthru
      _
    // Predicated region
    $region10: #{tpu_custom_call.1} parent=1 // pred_check
      _
    $region11: #{tpu_custom_call.1} parent=1 // pred_check_branch
      %17 = sbr.rel (0) target = $region13
    $region12: #{tpu_custom_call.1} parent=1 // pred_region
      _
    $region13: #{tpu_custom_call.1} parent=1 // pred_fallthru
      _
    // Predicated region
    $region14: #{tpu_custom_call.1} parent=1 // pred_check
      _
    $region15: #{tpu_custom_call.1} parent=1 // pred_check_branch
      %19 = sbr.rel (0) target = $region17
    $region16: #{tpu_custom_call.1} parent=1 // pred_region
      _
    $region17: #{tpu_custom_call.1} parent=1 // pred_fallthru
      _
    // Predicated region
    $region18: #{tpu_custom_call.1} parent=1 // pred_check
      _
    $region19: #{tpu_custom_call.1} parent=1 // pred_check_branch
      %21 = sbr.rel (0) target = $region21
    $region20: #{tpu_custom_call.1} parent=1 // pred_region
      _
    $region21: #{tpu_custom_call.1} parent=1 // pred_fallthru
      _
    // Predicated region
    $region22: #{tpu_custom_call.1} parent=1 // pred_check
      _
    $region23: #{tpu_custom_call.1} parent=1 // pred_check_branch
      %23 = sbr.rel (0) target = $region25
    $region24: #{tpu_custom_call.1} parent=1 // pred_region
      _
    $region25: #{tpu_custom_call.1} parent=1 // pred_fallthru
      _
    %v25 = vld [vmem:[%s0] sm:$0xff]
    %v26 = vld [vmem:[%s0 + $0x8] sm:$0xff]
    %v27 = vld [vmem:[%s1] sm:$0x1]
    %v28 = vld [vmem:[%s1 + $0x1] sm:$0x1]
    %vm29 = vcmask 261120
    %v30 = vsel %vm29, %v25, 0.0
    %31 = vadd.xlane.f32.xlu0 %v30
    %v32 = vpop.xlane.xlu0 %31
    %v33 = vsel %vm29, %v26, 0.0
    %34 = vadd.xlane.f32.xlu0 %v33
    %v35 = vpop.xlane.xlu0 %34
    %v36 = vmul.f32 %v25, %v25
    %v37 = vmul.f32 %v26, %v26
    %v38 = vsel %vm29, %v36, 0.0
    %39 = vadd.xlane.f32.xlu0 %v38
    %v40 = vpop.xlane.xlu0 %39
    %v41 = vsel %vm29, %v37, 0.0
    %42 = vadd.xlane.f32.xlu0 %v41
    %v43 = vpop.xlane.xlu0 %42
    %v44 = vmul.f32 %v32, 0.03125
    %v45 = vmul.f32 %v35, 0.03125
    %v46 = vmul.f32 %v32, %v44
    %v47 = vmul.f32 %v35, %v45
    %v48 = vsub.f32 %v40, %v46
    %v49 = vsub.f32 %v43, %v47
    %v50 = vmul.f32 %v48, 0.032258064
    %v51 = vmul.f32 %v49, 0.032258064
    %v52 = vmax.f32 %v50, 0.0
    %v53 = vmax.f32 %v51, 0.0
    %v54 = vrsqrt.pop %v52
    %v55 = vmul.f32 %v52, %v54
    %vm56 = vcmp.eq.f32.partialorder %v52, inf
    %v57 = vsel %vm56, %v52, %v55
    %vm58 = vcmp.eq.f32.partialorder %v52, 0.0
    %v59 = vand.u32 %v52, 2147483648
    %v60 = vsel %vm58, %v59, %v57
    %v61 = vrsqrt.pop %v53
    %v62 = vmul.f32 %v53, %v61
    %vm63 = vcmp.eq.f32.partialorder %v53, inf
    %v64 = vsel %vm63, %v53, %v62
    %vm65 = vcmp.eq.f32.partialorder %v53, 0.0
    %v66 = vand.u32 %v53, 2147483648
    %v67 = vsel %vm65, %v66, %v64
    %v68 = vadd.f32 %v60, 1e-06
    %v69 = vadd.f32 %v67, 1e-06
    %v70 = vrcp.pop %v68
    %v71 = vrcp.pop %v69
    %v72 = vsub.f32 %v25, %v44
    %v73 = vsub.f32 %v26, %v45
    %v74 = vmul.f32 %v72, %v70
    %v75 = vmul.f32 %v73, %v71
    %v76 = vlaneseq
    %v77 = vshrl.u32 %v76, 7
    %v78 = vsub.s32 0, %v77
    %v79 = vrot.slane %v27, %v78
    %v80 = vmul.f32 %v79, %v74
    %v81 = vmul.f32 %v79, %v75
    %v82 = vlaneseq
    %v83 = vshrl.u32 %v82, 7
    %v84 = vsub.s32 0, %v83
    %v85 = vrot.slane %v28, %v84
    %v86 = vadd.f32 %v80, %v85
    %v87 = vadd.f32 %v81, %v85
    %v88 = vpack.c.bf16 %v87, %v86
    %v89 = vld [vmem:[%s2] sm:$0xf]
    %v90 = vld [vmem:[%s2 + $0x4] sm:$0xf]
    %v91 = vld [vmem:[%s2 + $0x8] sm:$0xf]
    %v92 = vld [vmem:[%s2 + $0xc] sm:$0xf]
    %v93 = vld [vmem:[%s3] sm:$0x1]
    %v95 = vlaneseq
    %v96 = vshrl.u32 %v95, 7
    %v97 = vsub.s32 0, %v96
    %v98 = vrot.slane %v93, %v97
    %v104 = vunpack.c.l.b16 %v89
    %v105 = vunpack.c.l.b16 %v90
    %v106 = vunpack.c.l.b16 %v91
    %v107 = vunpack.c.l.b16 %v92
    %v108 = vpack.c.b16 %v105, %v104
    %v109 = vpack.c.b16 %v107, %v106
    %v113 = vsel %vm29, %v88, 0
    %115 = vmatprep.subr.bf16.mxu0 0
    %116 = vmatpush1.bf16.msra.mxu0 %v108
    %117 = vmatprep.subr.bf16.mxu0 0
    %118 = vmatpush1.bf16.msra.mxu0 %v109
    %119 = vmatprep.subr.bf16.mxu0 0
    %120 = vmatpush1.bf16.msra.mxu0 0
    %121 = vmatprep.subr.bf16.mxu0 0
    %122 = vmatpush1.bf16.msra.mxu0 0
    %123 = vmatprep.subr.bf16.mxu0 0
    %124 = vmatpush1.bf16.msra.mxu0 0
    %125 = vmatprep.subr.bf16.mxu0 0
    %126 = vmatpush1.bf16.msra.mxu0 0
    %127 = vmatprep.subr.bf16.mxu0 0
    %128 = vmatpush1.bf16.msra.mxu0 0
    %129 = vmatprep.subr.bf16.mxu0 0
    %130 = vmatpush1.bf16.msra.mxu0 0
    %131 = vmatprep.subr.bf16.mxu0 0
    %132 = vmatpush1.bf16.msra.mxu0 0
    %133 = vmatprep.subr.bf16.mxu0 0
    %134 = vmatpush1.bf16.msra.mxu0 0
    %135 = vmatprep.subr.bf16.mxu0 0
    %136 = vmatpush1.bf16.msra.mxu0 0
    %137 = vmatprep.subr.bf16.mxu0 0
    %138 = vmatpush1.bf16.msra.mxu0 0
    %139 = vmatprep.subr.bf16.mxu0 0
    %140 = vmatpush1.bf16.msra.mxu0 0
    %141 = vmatprep.subr.bf16.mxu0 0
    %142 = vmatpush1.bf16.msra.mxu0 0
    %143 = vmatprep.subr.bf16.mxu0 0
    %144 = vmatpush1.bf16.msra.mxu0 0
    %145 = vmatprep.subr.bf16.mxu0 0
    %146 = vmatpush1.bf16.msra.mxu0 0
    %147 = vmatprep.mubr.bf16.mxu0 0
    %148 = vmatmul.mubr.bf16.gmra.mrb[0].mxu0 %v113
    %v149 = vpop.f32.mrb[0].mxu0
    %v150 = vadd.f32 %v98, %v149
    %v151 = vpop.f32.mrb[0].mxu0
    %v152 = vpop.f32.mrb[0].mxu0
    %v153 = vadd.f32 %v98, %v152
    %v154 = vpop.f32.mrb[0].mxu0
    %155 = vdwg.mxu0
    %v156 = vpack.c.bf16 %v153, %v150
    %v157 = vmax.bf16 %v156, 0
    %v158 = vld [vmem:[%s4] sm:$0xf]
    %v159 = vld [vmem:[%s4 + $0x4] sm:$0xf]
    %v160 = vld [vmem:[%s4 + $0x8] sm:$0xf]
    %v161 = vld [vmem:[%s4 + $0xc] sm:$0xf]
    %v162 = vld [vmem:[%s4 + $0x10] sm:$0xf]
    %v163 = vld [vmem:[%s4 + $0x14] sm:$0xf]
    %v164 = vld [vmem:[%s4 + $0x18] sm:$0xf]
    %v165 = vld [vmem:[%s4 + $0x1c] sm:$0xf]
    %v166 = vld [vmem:[%s4 + $0x20] sm:$0xf]
    %v167 = vld [vmem:[%s4 + $0x24] sm:$0xf]
    %v168 = vld [vmem:[%s4 + $0x28] sm:$0xf]
    %v169 = vld [vmem:[%s4 + $0x2c] sm:$0xf]
    %v170 = vld [vmem:[%s4 + $0x30] sm:$0xf]
    %v171 = vld [vmem:[%s4 + $0x34] sm:$0xf]
    %v172 = vld [vmem:[%s4 + $0x38] sm:$0xf]
    %v173 = vld [vmem:[%s4 + $0x3c] sm:$0xf]
    %v174 = vld [vmem:[%s5] sm:$0x1]
    %v176 = vlaneseq
    %v177 = vshrl.u32 %v176, 7
    %v178 = vsub.s32 0, %v177
    %v179 = vrot.slane %v174, %v178
    %v197 = vunpack.c.l.b16 %v158
    %v198 = vunpack.c.l.b16 %v159
    %v199 = vunpack.c.l.b16 %v160
    %v200 = vunpack.c.l.b16 %v161
    %v201 = vunpack.c.l.b16 %v162
    %v202 = vunpack.c.l.b16 %v163
    %v203 = vunpack.c.l.b16 %v164
    %v204 = vunpack.c.l.b16 %v165
    %v205 = vunpack.c.l.b16 %v166
    %v206 = vunpack.c.l.b16 %v167
    %v207 = vunpack.c.l.b16 %v168
    %v208 = vunpack.c.l.b16 %v169
    %v209 = vunpack.c.l.b16 %v170
    %v210 = vunpack.c.l.b16 %v171
    %v211 = vunpack.c.l.b16 %v172
    %v212 = vunpack.c.l.b16 %v173
    %v213 = vpack.c.b16 %v198, %v197
    %v214 = vpack.c.b16 %v200, %v199
    %v215 = vpack.c.b16 %v202, %v201
    %v216 = vpack.c.b16 %v204, %v203
    %v217 = vpack.c.b16 %v206, %v205
    %v218 = vpack.c.b16 %v208, %v207
    %v219 = vpack.c.b16 %v210, %v209
    %v220 = vpack.c.b16 %v212, %v211
    %229 = vmatprep.subr.bf16.mxu0 0
    %230 = vmatpush1.bf16.msra.mxu0 %v213
    %231 = vmatprep.subr.bf16.mxu0 0
    %232 = vmatpush1.bf16.msra.mxu0 %v214
    %233 = vmatprep.subr.bf16.mxu0 0
    %234 = vmatpush1.bf16.msra.mxu0 %v215
    %235 = vmatprep.subr.bf16.mxu0 0
    %236 = vmatpush1.bf16.msra.mxu0 %v216
    %237 = vmatprep.subr.bf16.mxu0 0
    %238 = vmatpush1.bf16.msra.mxu0 %v217
    %239 = vmatprep.subr.bf16.mxu0 0
    %240 = vmatpush1.bf16.msra.mxu0 %v218
    %241 = vmatprep.subr.bf16.mxu0 0
    %242 = vmatpush1.bf16.msra.mxu0 %v219
    %243 = vmatprep.subr.bf16.mxu0 0
    %244 = vmatpush1.bf16.msra.mxu0 %v220
    %245 = vmatprep.subr.bf16.mxu0 0
    %246 = vmatpush1.bf16.msra.mxu0 0
    %247 = vmatprep.subr.bf16.mxu0 0
    %248 = vmatpush1.bf16.msra.mxu0 0
    %249 = vmatprep.subr.bf16.mxu0 0
    %250 = vmatpush1.bf16.msra.mxu0 0
    %251 = vmatprep.subr.bf16.mxu0 0
    %252 = vmatpush1.bf16.msra.mxu0 0
    %253 = vmatprep.subr.bf16.mxu0 0
    %254 = vmatpush1.bf16.msra.mxu0 0
    %255 = vmatprep.subr.bf16.mxu0 0
    %256 = vmatpush1.bf16.msra.mxu0 0
    %257 = vmatprep.subr.bf16.mxu0 0
    %258 = vmatpush1.bf16.msra.mxu0 0
    %259 = vmatprep.subr.bf16.mxu0 0
    %260 = vmatpush1.bf16.msra.mxu0 0
    %261 = vmatprep.mubr.bf16.mxu0 0
    %262 = vmatmul.mubr.bf16.gmra.mrb[0].mxu0 %v157
    %v263 = vpop.f32.mrb[0].mxu0
    %v264 = vadd.f32 %v179, %v263
    %v265 = vpop.f32.mrb[0].mxu0
    %v266 = vpop.f32.mrb[0].mxu0
    %v267 = vadd.f32 %v179, %v266
    %v268 = vpop.f32.mrb[0].mxu0
    %269 = vdwg.mxu0
    %v270 = vadd.f32 %v25, %v264
    %v271 = vadd.f32 %v26, %v267
    %272 = vst.msk [vmem:[#allocation2] sm:$0xff] %vm29, %v270
    %273 = vst.msk [vmem:[#allocation2 + $0x8] sm:$0xff] %vm29, %v271
    // Predicated region
    $region26: #{tpu_custom_call.1} parent=1 // pred_check
      _
    $region27: #{tpu_custom_call.1} parent=1 // pred_check_branch
      %275 = sbr.rel (0) target = $region29
    $region28: #{tpu_custom_call.1} parent=1 // pred_region
      %s277 = ssub.s32 256, 256
      %278 = vsyncadd [#allocation3], %s277
      %s279 = sshll.u32 [#allocation2], 4
      %s280 = int_to_ptr.vmem [resolvable:$true] %s279
      %285 = dma.vmem_to_hbm [thread:$0]  %s280, 256, %s6, [#allocation3], 128, 128, 8
    $region29: #{tpu_custom_call.1} parent=1 // pred_fallthru
      _
    // Predicated region
    $region30: #{tpu_custom_call.1} parent=1 // pred_check
      _
    $region31: #{tpu_custom_call.1} parent=1 // pred_check_branch
      %287 = sbr.rel (0) target = $region33
    $region32: #{tpu_custom_call.1} parent=1 // pred_region
      %288 = dma.done [#allocation3], 256
    $region33: #{tpu_custom_call.1} parent=1 // pred_fallthru
      _
    %289 = vsyncpa [#allocation3], 1

</llo_original>
